<compile_context>
chip_gen: v6e
topology: v6e:2x2x1
jax: 0.10.0
libtpu: 0.0.40
codegen_flags: <defaults>
</compile_context>

<pallas_src>
import jax
import jax.numpy as jnp
import numpy as np
from jax.experimental import pallas as pl
from jax.experimental.pallas import tpu as pltpu


def _gcn_fused_kernel(x_ref, w_ref, b_ref, o_ref):
    # x_ref: (M_blk, Kpad)   row block of channels-last activations
    # w_ref: (Kpad, Npad)    fused (conv-weight x adjacency) matrix (resident)
    # b_ref: (1, Npad)       bias folded through the adjacency (f32)
    # o_ref: (M_blk, Npad)   lane-dense output block
    acc = jnp.dot(x_ref[...], w_ref[...], preferred_element_type=jnp.float32)
    o_ref[...] = (acc + b_ref[...]).astype(o_ref.dtype)


def _round_up(x, m):
    return ((x + m - 1) // m) * m


def _choose_row_tiling(rows, compute_bytes):
    """Pad-and-tile row blocking.

    Returns (m_blk, rows_padded). m_blk is a multiple of 256 (full MXU M tile
    on v6e/v7x, 2x the v5e 128 tile) except for tiny problems, and the grid
    gets >= 2 steps whenever rows > 256 so dimension_semantics=("parallel",)
    can shard work across v7x's two TensorCores.
    """
    target = 512 if compute_bytes >= 4 else 1024   # larger tiles for bf16
    if rows <= 256:
        m_blk = _round_up(rows, 8)                 # tiny problem: one block
        return m_blk, m_blk
    m_blk = target if rows >= 2 * target else 256
    rows_padded = _round_up(rows, m_blk)
    return m_blk, rows_padded


def conv_temporal_graphical(x, adj, weight, bias, kernel_size, *,
                            compute_dtype=None, out_dtype=None,
                            channels_last=False):
    """Forward pass of ConvTemporalGraphical (t_kernel_size=1, t_stride=1).

    x:      (N, C_in, T, V) if not channels_last else (N, T, V, C_in)
    adj:    (K, V, V)
    weight: (K*C_out, C_in, 1, 1)   (PyTorch Conv2d weight)
    bias:   (K*C_out,)
    compute_dtype: e.g. jnp.bfloat16 on v6e/v7x (f32 accumulation is kept).
    out_dtype:     output element dtype (defaults to x.dtype).
    returns (out, adj); out is (N, C_out, T, V) (or (N, T, V, C_out) if
    channels_last).
    """
    K = kernel_size
    if channels_last:
        N, T, V, C_in = x.shape
    else:
        N, C_in, T, V = x.shape
    KC = weight.shape[0]
    assert adj.shape[0] == K
    C_out = KC // K

    # ---- one-time parameter fusion (plain JAX, jit-cached) ----
    w3 = weight.reshape(K, C_out, C_in)                               # (K, C_out, C_in)
    # Wbig[(v, ci), (w, c)] = sum_k W[k, c, ci] * adj[k, v, w]
    w_big = jnp.einsum('kci,kvw->viwc', w3, adj,
                       precision='highest').reshape(V * C_in, V * C_out)
    # b_eff[w, c] = sum_k b[k, c] * sum_v adj[k, v, w]
    b2 = bias.reshape(K, C_out)
    b_eff = jnp.einsum('kc,kvw->wc', b2, adj,
                       precision='highest').reshape(1, V * C_out).astype(jnp.float32)

    # ---- activations -> (rows, V*C_in) channels-last slab ----
    if channels_last:
        x_rows = x.reshape(N * T, V * C_in)
    else:
        # TODO(synk): keep the surrounding ST-GCN stack channels-last end-to-end
        # so both wrapper transposes (full extra HBM passes) disappear.
        x_rows = jnp.transpose(x, (0, 2, 3, 1)).reshape(N * T, V * C_in)

    out_dtype = out_dtype if out_dtype is not None else x.dtype
    if compute_dtype is not None:
        x_rows = x_rows.astype(compute_dtype)
        w_big = w_big.astype(compute_dtype)
    compute_bytes = jnp.dtype(x_rows.dtype).itemsize

    rows = N * T
    k_dim = V * C_in
    n_dim = V * C_out

    # ---- lane-dense padding: contraction & output dims -> multiples of 128 ----
    k_pad = _round_up(k_dim, 128)
    n_pad = _round_up(n_dim, 128)
    m_blk, rows_padded = _choose_row_tiling(rows, compute_bytes)

    if rows_padded != rows or k_pad != k_dim:
        x_rows = jnp.pad(x_rows, ((0, rows_padded - rows), (0, k_pad - k_dim)))
    if k_pad != k_dim or n_pad != n_dim:
        w_big = jnp.pad(w_big, ((0, k_pad - k_dim), (0, n_pad - n_dim)))
    if n_pad != n_dim:
        b_eff = jnp.pad(b_eff, ((0, 0), (0, n_pad - n_dim)))

    grid = (rows_padded // m_blk,)

    # ---- explicit VMEM budget (matters on v7x 64 MiB / v5e 16 MiB scoped) ----
    out_bytes = jnp.dtype(out_dtype).itemsize
    w_resident = k_pad * n_pad * compute_bytes + n_pad * 4        # single-buffered
    blk_resident = 2 * m_blk * (k_pad * compute_bytes + n_pad * out_bytes)
    vmem_need = w_resident + blk_resident
    vmem_limit = int(min(max(2 * vmem_need, 4 << 20), 64 << 20))

    out_rows = pl.pallas_call(
        _gcn_fused_kernel,
        out_shape=jax.ShapeDtypeStruct((rows_padded, n_pad), out_dtype),
        grid=grid,
        in_specs=[
            pl.BlockSpec((m_blk, k_pad), lambda i: (i, 0)),
            # Constant index_map -> single-buffer the resident weight / bias.
            pl.BlockSpec((k_pad, n_pad), lambda i: (0, 0),
                         pipeline_mode=pl.Buffered(1)),
            pl.BlockSpec((1, n_pad), lambda i: (0, 0),
                         pipeline_mode=pl.Buffered(1)),
        ],
        out_specs=pl.BlockSpec((m_blk, n_pad), lambda i: (i, 0)),
        compiler_params=pltpu.CompilerParams(
            dimension_semantics=("parallel",),
            vmem_limit_bytes=vmem_limit),
    )(x_rows, w_big, b_eff)

    out_rows = out_rows[:rows, :n_dim]
    out_ntvc = out_rows.reshape(N, T, V, C_out)
    if channels_last:
        return out_ntvc, adj
    return jnp.transpose(out_ntvc, (0, 3, 1, 2)), adj


def _reference(x, adj, weight, bias, K):
    """Pure-JAX reference mirroring the PyTorch forward (NCHW)."""
    KC, C_in = weight.shape[0], weight.shape[1]
    w2 = weight.reshape(KC, C_in)
    y = jnp.einsum('nctv,oc->notv', x, w2, precision='highest') \
        + bias[None, :, None, None]
    N, _, T, V = y.shape
    y = y.reshape(N, K, KC // K, T, V)
    return jnp.einsum('nkctv,kvw->nctw', y, adj, precision='highest')


if __name__ == "__main__":
    key = jax.random.PRNGKey(0)
    kx, ka, kw, kb = jax.random.split(key, 4)

    # Shapes consistent with the module (nn.Conv2d(C_in, K*C_out, (1,1))).
    N, C_in, T, V = 2, 4, 8, 16
    K, C_out = 3, 8                           # V*C_out = 128 -> lane-dense out

    x = jax.random.normal(kx, (N, C_in, T, V), dtype=jnp.float32)
    adj = jax.random.normal(ka, (K, V, V), dtype=jnp.float32)
    weight = jax.random.normal(kw, (K * C_out, C_in, 1, 1), dtype=jnp.float32) * 0.1
    bias = jax.random.normal(kb, (K * C_out,), dtype=jnp.float32) * 0.1

    # Case 1: base shapes (single padded block).
    out, adj_out = conv_temporal_graphical(x, adj, weight, bias, K)
    out = jax.block_until_ready(out)
    ref = jax.block_until_ready(_reference(x, adj, weight, bias, K))
    np.testing.assert_allclose(np.asarray(out), np.asarray(ref), rtol=1e-4, atol=1e-4)
    assert out.shape == (N, C_out, T, V)
    assert adj_out.shape == adj.shape

    # Case 2: awkward row count (N*T = 300) -> exercises pad-and-tile, grid=(2,).
    N2, T2 = 2, 150
    x2 = jax.random.normal(jax.random.fold_in(kx, 1), (N2, C_in, T2, V),
                           dtype=jnp.float32)
    out2, _ = conv_temporal_graphical(x2, adj, weight, bias, K)
    out2 = jax.block_until_ready(out2)
    ref2 = jax.block_until_ready(_reference(x2, adj, weight, bias, K))
    np.testing.assert_allclose(np.asarray(out2), np.asarray(ref2), rtol=1e-4, atol=1e-4)

    # Case 3: channels-last fast path (no wrapper transposes), same numerics.
    x2_cl = jnp.transpose(x2, (0, 2, 3, 1))
    out3, _ = conv_temporal_graphical(x2_cl, adj, weight, bias, K,
                                      channels_last=True)
    out3 = jax.block_until_ready(out3)
    np.testing.assert_allclose(np.asarray(jnp.transpose(out3, (0, 3, 1, 2))),
                               np.asarray(ref2), rtol=1e-4, atol=1e-4)

    print("KERNEL_OK")
</pallas_src>

<mosaic_0001>
module attributes {stable_mosaic.version = 11 : i64} {
  func.func @_gcn_fused_kernel(%arg0: i32, %arg1: memref<16x128xf32, #tpu.memory_space<vmem>>, %arg2: memref<128x128xf32, #tpu.memory_space<vmem>>, %arg3: memref<1x128xf32, #tpu.memory_space<vmem>>, %arg4: memref<16x128xf32, #tpu.memory_space<vmem>>) attributes {dimension_semantics = [#tpu.dimension_semantics<parallel>], iteration_bounds = array<i64: 1>, scalar_prefetch = 0 : i64, scratch_operands = 0 : i64, tpu.core_type = #tpu.core_type<tc>, window_params = [{transform_indices = @transform_0, window_bounds = array<i64: 16, 128>}, {pipeline_mode = #tpu.pipeline_mode<synchronous>, transform_indices = @transform_1, window_bounds = array<i64: 128, 128>}, {pipeline_mode = #tpu.pipeline_mode<synchronous>, transform_indices = @transform_2, window_bounds = array<i64: 1, 128>}, {transform_indices = @transform_3, window_bounds = array<i64: 16, 128>}]} {
    %c0 = arith.constant 0 : index
    %c0_0 = arith.constant 0 : index
    %0 = vector.load %arg1[%c0, %c0_0] : memref<16x128xf32, #tpu.memory_space<vmem>>, vector<16x128xf32>
    %c0_1 = arith.constant 0 : index
    %c0_2 = arith.constant 0 : index
    %1 = vector.load %arg2[%c0_1, %c0_2] : memref<128x128xf32, #tpu.memory_space<vmem>>, vector<128x128xf32>
    %cst = arith.constant dense<0.000000e+00> : vector<16x128xf32>
    %2 = tpu.matmul %0, %1, %cst {dimension_numbers = #tpu.dot_dimension_numbers<[1], [0], [0], [1], [0, 0, 1, 1], [], []>} : vector<16x128xf32>, vector<128x128xf32>, vector<16x128xf32> -> vector<16x128xf32>
    %c0_3 = arith.constant 0 : index
    %c0_4 = arith.constant 0 : index
    %3 = vector.load %arg3[%c0_3, %c0_4] : memref<1x128xf32, #tpu.memory_space<vmem>>, vector<1x128xf32>
    %4 = vector.broadcast %3 : vector<1x128xf32> to vector<16x128xf32>
    %5 = arith.addf %2, %4 : vector<16x128xf32>
    %c0_5 = arith.constant 0 : index
    %c0_6 = arith.constant 0 : index
    %6 = vector.load %arg4[%c0_5, %c0_6] : memref<16x128xf32, #tpu.memory_space<vmem>>, vector<16x128xf32>
    tpu.vector_store %arg4[%c0_5, %c0_6], %5 {strides = array<i32>} : memref<16x128xf32, #tpu.memory_space<vmem>>, vector<16x128xf32>,
    return
  }
  func.func @transform_0(%arg0: i32) -> (i32, i32) {
    %c0_i32 = arith.constant 0 : i32
    %c0_i32_0 = arith.constant 0 : i32
    return %arg0, %c0_i32 : i32, i32
  }
  func.func @transform_1(%arg0: i32) -> (i32, i32) {
    %c0_i32 = arith.constant 0 : i32
    %c0_i32_0 = arith.constant 0 : i32
    %c0_i32_1 = arith.constant 0 : i32
    return %c0_i32, %c0_i32_0 : i32, i32
  }
  func.func @transform_2(%arg0: i32) -> (i32, i32) {
    %c0_i32 = arith.constant 0 : i32
    %c0_i32_0 = arith.constant 0 : i32
    %c0_i32_1 = arith.constant 0 : i32
    return %c0_i32, %c0_i32_0 : i32, i32
  }
  func.func @transform_3(%arg0: i32) -> (i32, i32) {
    %c0_i32 = arith.constant 0 : i32
    %c0_i32_0 = arith.constant 0 : i32
    return %arg0, %c0_i32 : i32, i32
  }
}

</mosaic_0001>

<llo_original>
// kernel: tpu_custom_call.1
$region0: #{tpu_custom_call.1}
  #allocation0 [shape = 'u32[]', space=smem, size = 0x4, offset = 0x4, fixed_abs, tag = 'smem constant byte address 0x4 - core index']
  #allocation1 [shape = 'u32[144,128]{1,0:T(1,128)}', space=vmem, size = 0x12000, scoped, tag = 'internal scratch']
  %s0 = inlined_call_operand.hbm [shape: f32[16,128], index: 0, kind: input, shape index: {}]
  %s1 = inlined_call_operand.hbm [shape: f32[128,128], index: 1, kind: input, shape index: {}]
  %s2 = inlined_call_operand.vmem [shape: f32[1,128], index: 2, kind: input, shape index: {}]
  %s3 = inlined_call_operand.hbm [shape: f32[16,128], index: 3, kind: output, shape index: {}]
  %s4 = sld [smem:[#allocation0]]
  $region30: #{tpu_custom_call.1} parent=0
    _
  %s6 = ssub.s32 1, %s4
  %s7 = scalar_select 0, %s6, %s4
  $region1: #{tpu_custom_call.1} parent=0
    #allocation2 [shape = 'u8[8192]{0}', space=vmem, size = 0x2000, scoped, tag = 'input window, operand 0, single buffered']
    #allocation3 [shape = 's32[1]{0}', space=sflag, size = 0x4, scoped, tag = 'scoped memory for tpu_custom_call.1']
    #allocation4 [shape = 's32[1]{0}', space=sflag, size = 0x4, scoped, tag = 'scoped memory for tpu_custom_call.1']
    #allocation5 [shape = 'u8[65536]{0}', space=vmem, size = 0x10000, scoped, tag = 'input window, operand 1, single buffered']
    #allocation6 [shape = 's32[1]{0}', space=sflag, size = 0x4, scoped, tag = 'scoped memory for tpu_custom_call.1']
    #allocation7 [shape = 'u8[8192]{0}', space=vmem, size = 0x2000, scoped, tag = 'output window, operand 0, single buffered']
    %8 = vsyncpa [#allocation3], 0
    %9 = vsyncpa [#allocation6], 0
    %10 = vsyncpa [#allocation4], 0
    // Predicated region
    $region2: #{tpu_custom_call.1} parent=1 // pred_check
      _
    $region3: #{tpu_custom_call.1} parent=1 // pred_check_branch
      %12 = sbr.rel (0) target = $region5
    $region4: #{tpu_custom_call.1} parent=1 // pred_region
      %s14 = ssub.s32 256, 256
      %15 = vsyncadd [#allocation3], %s14
      %s16 = sshll.u32 [#allocation2], 4
      %s17 = int_to_ptr.vmem [resolvable:$true] %s16
      %22 = dma.hbm_to_vmem [thread:$0]  %s0, 256, %s17, [#allocation3], 128, 128, 8
    $region5: #{tpu_custom_call.1} parent=1 // pred_fallthru
      _
    // Predicated region
    $region6: #{tpu_custom_call.1} parent=1 // pred_check
      _
    $region7: #{tpu_custom_call.1} parent=1 // pred_check_branch
      %24 = sbr.rel (0) target = $region9
    $region8: #{tpu_custom_call.1} parent=1 // pred_region
      %s26 = ssub.s32 2048, 2048
      %27 = vsyncadd [#allocation6], %s26
      %s28 = sshll.u32 [#allocation5], 4
      %s29 = int_to_ptr.vmem [resolvable:$true] %s28
      %34 = dma.hbm_to_vmem [thread:$0]  %s1, 2048, %s29, [#allocation6], 128, 128, 8
    $region9: #{tpu_custom_call.1} parent=1 // pred_fallthru
      _
    // Predicated region
    $region10: #{tpu_custom_call.1} parent=1 // pred_check
      _
    $region11: #{tpu_custom_call.1} parent=1 // pred_check_branch
      %36 = sbr.rel (0) target = $region13
    $region12: #{tpu_custom_call.1} parent=1 // pred_region
      _
    $region13: #{tpu_custom_call.1} parent=1 // pred_fallthru
      _
    // Predicated region
    $region14: #{tpu_custom_call.1} parent=1 // pred_check
      _
    $region15: #{tpu_custom_call.1} parent=1 // pred_check_branch
      %38 = sbr.rel (0) target = $region17
    $region16: #{tpu_custom_call.1} parent=1 // pred_region
      %39 = dma.done [#allocation3], 256
    $region17: #{tpu_custom_call.1} parent=1 // pred_fallthru
      _
    // Predicated region
    $region18: #{tpu_custom_call.1} parent=1 // pred_check
      _
    $region19: #{tpu_custom_call.1} parent=1 // pred_check_branch
      %41 = sbr.rel (0) target = $region21
    $region20: #{tpu_custom_call.1} parent=1 // pred_region
      %42 = dma.done [#allocation6], 2048
    $region21: #{tpu_custom_call.1} parent=1 // pred_fallthru
      _
    %v43 = vld [vmem:[#allocation2] sm:$0xff]
    %v44 = vld [vmem:[#allocation2 + $0x8] sm:$0xff]
    %v45 = vld [vmem:[#allocation5] sm:$0xff]
    %v46 = vld [vmem:[#allocation5 + $0x8] sm:$0xff]
    %v47 = vld [vmem:[#allocation5 + $0x10] sm:$0xff]
    %v48 = vld [vmem:[#allocation5 + $0x18] sm:$0xff]
    %v49 = vld [vmem:[#allocation5 + $0x20] sm:$0xff]
    %v50 = vld [vmem:[#allocation5 + $0x28] sm:$0xff]
    %v51 = vld [vmem:[#allocation5 + $0x30] sm:$0xff]
    %v52 = vld [vmem:[#allocation5 + $0x38] sm:$0xff]
    %v53 = vld [vmem:[#allocation5 + $0x40] sm:$0xff]
    %v54 = vld [vmem:[#allocation5 + $0x48] sm:$0xff]
    %v55 = vld [vmem:[#allocation5 + $0x50] sm:$0xff]
    %v56 = vld [vmem:[#allocation5 + $0x58] sm:$0xff]
    %v57 = vld [vmem:[#allocation5 + $0x60] sm:$0xff]
    %v58 = vld [vmem:[#allocation5 + $0x68] sm:$0xff]
    %v59 = vld [vmem:[#allocation5 + $0x70] sm:$0xff]
    %v60 = vld [vmem:[#allocation5 + $0x78] sm:$0xff]
    %v61 = vld [vmem:[%s2] sm:$0x1]
    %v63 = vlaneseq
    %v64 = vshrl.u32 %v63, 7
    %v65 = vsub.s32 0, %v64
    %v66 = vrot.slane %v61, %v65
    %68 = vmatprep.subr.mxu0 0.0
    %69 = vmatpush1.msra.mxu0 %v60
    %70 = vmatprep.subr.mxu0 0.0
    %71 = vmatpush1.msra.mxu0 %v59
    %72 = vmatprep.subr.mxu0 0.0
    %73 = vmatpush1.msra.mxu0 %v58
    %74 = vmatprep.subr.mxu0 0.0
    %75 = vmatpush1.msra.mxu0 %v57
    %76 = vmatprep.subr.mxu0 0.0
    %77 = vmatpush1.msra.mxu0 %v56
    %78 = vmatprep.subr.mxu0 0.0
    %79 = vmatpush1.msra.mxu0 %v55
    %80 = vmatprep.subr.mxu0 0.0
    %81 = vmatpush1.msra.mxu0 %v54
    %82 = vmatprep.subr.mxu0 0.0
    %83 = vmatpush1.msra.mxu0 %v53
    %84 = vmatprep.subr.mxu0 0.0
    %85 = vmatpush1.msra.mxu0 %v52
    %86 = vmatprep.subr.mxu0 0.0
    %87 = vmatpush1.msra.mxu0 %v51
    %88 = vmatprep.subr.mxu0 0.0
    %89 = vmatpush1.msra.mxu0 %v50
    %90 = vmatprep.subr.mxu0 0.0
    %91 = vmatpush1.msra.mxu0 %v49
    %92 = vmatprep.subr.mxu0 0.0
    %93 = vmatpush1.msra.mxu0 %v48
    %94 = vmatprep.subr.mxu0 0.0
    %95 = vmatpush1.msra.mxu0 %v47
    %96 = vmatprep.subr.mxu0 0.0
    %97 = vmatpush1.msra.mxu0 %v46
    %98 = vmatprep.subr.mxu0 0.0
    %99 = vmatpush1.msra.mxu0 %v45
    %100 = vmatprep.subr.mxu0 0.0
    %101 = vmatpush2.msra.mxu0 0.0
    %102 = vmatprep.subr.mxu0 0.0
    %103 = vmatpush2.msra.mxu0 0.0
    %104 = vmatprep.subr.mxu0 0.0
    %105 = vmatpush2.msra.mxu0 0.0
    %106 = vmatprep.subr.mxu0 0.0
    %107 = vmatpush2.msra.mxu0 0.0
    %108 = vmatprep.subr.mxu0 0.0
    %109 = vmatpush2.msra.mxu0 0.0
    %110 = vmatprep.subr.mxu0 0.0
    %111 = vmatpush2.msra.mxu0 0.0
    %112 = vmatprep.subr.mxu0 0.0
    %113 = vmatpush2.msra.mxu0 0.0
    %114 = vmatprep.subr.mxu0 0.0
    %115 = vmatpush2.msra.mxu0 0.0
    %116 = vmatprep.subr.mxu0 0.0
    %117 = vmatpush2.msra.mxu0 0.0
    %118 = vmatprep.subr.mxu0 0.0
    %119 = vmatpush2.msra.mxu0 0.0
    %120 = vmatprep.subr.mxu0 0.0
    %121 = vmatpush2.msra.mxu0 0.0
    %122 = vmatprep.subr.mxu0 0.0
    %123 = vmatpush2.msra.mxu0 0.0
    %124 = vmatprep.subr.mxu0 0.0
    %125 = vmatpush2.msra.mxu0 0.0
    %126 = vmatprep.subr.mxu0 0.0
    %127 = vmatpush2.msra.mxu0 0.0
    %128 = vmatprep.subr.mxu0 0.0
    %129 = vmatpush2.msra.mxu0 0.0
    %130 = vmatprep.subr.mxu0 0.0
    %131 = vmatpush2.msra.mxu0 0.0
    %132 = vmatprep.mubr.f32.mxu0 0.0
    %133 = vmatmul.mubr.f32.gmra.mxu0 %v43
    %v134 = vpop.f32.mrf.mxu0
    %v135 = vadd.f32 %v66, %v134
    %v136 = vpop.f32.mrf.mxu0
    %137 = vmatprep.mubr.f32.mxu0 0.0
    %138 = vmatmul.mubr.f32.gmra.mxu0 %v44
    %v139 = vpop.f32.mrf.mxu0
    %v140 = vadd.f32 %v66, %v139
    %v141 = vpop.f32.mrf.mxu0
    %142 = vdwg.mxu0
    %143 = vst [vmem:[#allocation7] sm:$0xff] %v135
    %144 = vst [vmem:[#allocation7 + $0x8] sm:$0xff] %v140
    // Predicated region
    $region22: #{tpu_custom_call.1} parent=1 // pred_check
      _
    $region23: #{tpu_custom_call.1} parent=1 // pred_check_branch
      %146 = sbr.rel (0) target = $region25
    $region24: #{tpu_custom_call.1} parent=1 // pred_region
      %s148 = ssub.s32 256, 256
      %149 = vsyncadd [#allocation4], %s148
      %s150 = sshll.u32 [#allocation7], 4
      %s151 = int_to_ptr.vmem [resolvable:$true] %s150
      %156 = dma.vmem_to_hbm [thread:$0]  %s151, 256, %s3, [#allocation4], 128, 128, 8
    $region25: #{tpu_custom_call.1} parent=1 // pred_fallthru
      _
    // Predicated region
    $region26: #{tpu_custom_call.1} parent=1 // pred_check
      _
    $region27: #{tpu_custom_call.1} parent=1 // pred_check_branch
      %158 = sbr.rel (0) target = $region29
    $region28: #{tpu_custom_call.1} parent=1 // pred_region
      %159 = dma.done [#allocation4], 256
    $region29: #{tpu_custom_call.1} parent=1 // pred_fallthru
      _
    %160 = vsyncpa [#allocation3], 1
    %161 = vsyncpa [#allocation6], 1
    %162 = vsyncpa [#allocation4], 1

</llo_original>
